<compile_context>
chip_gen: v5e
topology: v5e:2x2
jax: 0.10.0
libtpu: 0.0.40
codegen_flags: <defaults>
</compile_context>

<pallas_src>
import functools

import jax
import jax.numpy as jnp
from jax.experimental import pallas as pl
from jax.experimental.pallas import tpu as pltpu


def _ce_kernel(x_ref, t_ref, out_ref, *, n_valid: int, block_n: int):
    """One row-tile: x_ref (TN, C), t_ref (TN, 1) int32, out_ref (1, 1) f32 accumulator."""
    i = pl.program_id(0)

    @pl.when(i == 0)
    def _():
        out_ref[...] = jnp.zeros_like(out_ref)

    x = x_ref[...].astype(jnp.float32)                         # (TN, C) — in-kernel cast
    t = t_ref[...]                                             # (TN, 1) int32

    # Gather x[r, target[r]] with a one-hot lane mask + lane reduce (XLU).
    col = jax.lax.broadcasted_iota(jnp.int32, x.shape, 1)      # (TN, C)
    picked = jnp.sum(jnp.where(col == t, x, jnp.float32(0)),
                     axis=1, keepdims=True)                    # (TN, 1)

    # Unshifted log-sum-exp, matching the torch module's exp -> sum -> log.
    lse = jnp.log(jnp.sum(jnp.exp(x), axis=1, keepdims=True))  # (TN, 1)

    # Mask padded rows of the (possibly partial) last block: their contents are
    # unspecified (may be inf/NaN after exp); jnp.where drops them before any sum.
    row = i * block_n + jax.lax.broadcasted_iota(jnp.int32, (block_n, 1), 0)
    valid = row < n_valid
    per_row = jnp.where(valid, lse - picked, jnp.float32(0))   # (TN, 1)

    # Per-tile partial sum (sublane reduce) folded into the resident accumulator.
    out_ref[...] += jnp.sum(per_row, keepdims=True)            # (1, 1)


def _pick_block_n(n: int, c: int) -> int:
    """Row tile sized against the f32 in-kernel working set, multiple of 8."""
    budget_elems = (2 << 20) // 4          # ~2 MiB of f32 elements per live block copy
    rows = budget_elems // max(c, 1)
    rows = max(8, min(1024, (rows // 8) * 8))
    rows = min(rows, ((n + 7) // 8) * 8)   # don't exceed (row-rounded) problem size
    return max(rows, 8)


def cross_entropy_loss(x: jax.Array, target: jax.Array, reduction: str = "mean",
                       block_n: int | None = None) -> jax.Array:
    """x: (N, C) float (f32 or bf16), target: (N,) int — returns scalar float32 loss."""
    n, c = x.shape
    if block_n is None:
        block_n = _pick_block_n(n, c)
    num_tiles = pl.cdiv(n, block_n)

    t2d = target.astype(jnp.int32).reshape(n, 1)

    kernel = functools.partial(_ce_kernel, n_valid=n, block_n=block_n)

    total = pl.pallas_call(
        kernel,
        out_shape=jax.ShapeDtypeStruct((1, 1), jnp.float32),
        grid=(num_tiles,),
        in_specs=[
            pl.BlockSpec((block_n, c), lambda i: (i, 0)),   # x tile (last block may be partial)
            pl.BlockSpec((block_n, 1), lambda i: (i, 0)),   # target tile
        ],
        out_specs=pl.BlockSpec((1, 1), lambda i: (0, 0)),   # resident scalar accumulator
        compiler_params=pltpu.CompilerParams(
            dimension_semantics=("arbitrary",),             # reduction axis
            vmem_limit_bytes=32 * 1024 * 1024,
        ),
        cost_estimate=pl.CostEstimate(
            flops=4 * n * c,
            transcendentals=n * c + n,
            bytes_accessed=n * c * x.dtype.itemsize + n * 4 + 4,
        ),
    )(x, t2d)

    loss = total[0, 0]
    if reduction == "mean":
        loss = loss / jnp.float32(n)   # TRUE batch size
    return loss


def _reference(x, target, reduction="mean"):
    xf = x.astype(jnp.float32)
    lse = jnp.log(jnp.sum(jnp.exp(xf), axis=1))
    picked = xf[jnp.arange(x.shape[0]), target]
    loss = jnp.sum(-picked + lse)
    if reduction == "mean":
        loss = loss / x.shape[0]
    return loss


if __name__ == "__main__":
    # Module-default shapes: x (4, 3), target = [2, 1, 0, 1].
    key = jax.random.PRNGKey(0)
    x = jax.random.uniform(key, (4, 3), dtype=jnp.float32)
    target = jnp.array([2, 1, 0, 1], dtype=jnp.int32)

    loss = cross_entropy_loss(x, target, reduction="mean")
    jax.block_until_ready(loss)
    ref = _reference(x, target, "mean")
    assert jnp.allclose(loss, ref, rtol=1e-5, atol=1e-5), (loss, ref)

    # Larger, non-aligned case exercising the multi-tile row grid + partial-last-block mask
    # (no wrapper padding anymore).
    kx, kt = jax.random.split(jax.random.PRNGKey(0))
    N, C = 37, 13
    x2 = jax.random.normal(kx, (N, C), dtype=jnp.float32)
    t2 = jax.random.randint(kt, (N,), 0, C, dtype=jnp.int32)
    for red in ("mean", "sum"):
        got = cross_entropy_loss(x2, t2, reduction=red, block_n=8)
        jax.block_until_ready(got)
        ref2 = _reference(x2, t2, red)
        assert jnp.allclose(got, ref2, rtol=1e-5, atol=1e-5), (red, got, ref2)

    # bf16 logits streamed as-is (half HBM traffic), f32 math inside the kernel.
    x3 = x2.astype(jnp.bfloat16)
    got_bf16 = cross_entropy_loss(x3, t2, reduction="mean", block_n=16)
    jax.block_until_ready(got_bf16)
    ref3 = _reference(x3, t2, "mean")
    assert jnp.allclose(got_bf16, ref3, rtol=1e-3, atol=1e-3), (got_bf16, ref3)

    print("KERNEL_OK")
</pallas_src>

<mosaic_0001>
module attributes {stable_mosaic.version = 11 : i64} {
  func.func @_ce_kernel(%arg0: i32, %arg1: memref<8x3xf32, #tpu.memory_space<vmem>>, %arg2: memref<8x1xi32, #tpu.memory_space<vmem>>, %arg3: memref<1x1xf32, #tpu.memory_space<vmem>>) attributes {dimension_semantics = [#tpu.dimension_semantics<arbitrary>], iteration_bounds = array<i64: 1>, scalar_prefetch = 0 : i64, scratch_operands = 0 : i64, tpu.core_type = #tpu.core_type<tc>, window_params = [{transform_indices = @transform_0, window_bounds = array<i64: 8, 3>}, {transform_indices = @transform_1, window_bounds = array<i64: 8, 1>}, {pipeline_mode = #tpu.pipeline_mode<synchronous>, transform_indices = @transform_2, window_bounds = array<i64: 1, 1>}]} {
    %c0_i32 = arith.constant 0 : i32
    %0 = arith.cmpi eq, %arg0, %c0_i32 : i32
    %1 = arith.extui %0 : i1 to i32
    %c0_i32_0 = arith.constant 0 : i32
    %2 = arith.cmpi ne, %1, %c0_i32_0 : i32
    scf.if %2 {
      %cst_12 = arith.constant 0.000000e+00 : f32
      %33 = vector.broadcast %cst_12 : f32 to vector<1x1xf32>
      %c0_13 = arith.constant 0 : index
      %c0_14 = arith.constant 0 : index
      %34 = vector.load %arg3[%c0_13, %c0_14] : memref<1x1xf32, #tpu.memory_space<vmem>>, vector<1x1xf32>
      tpu.vector_store %arg3[%c0_13, %c0_14], %33 {strides = array<i32>} : memref<1x1xf32, #tpu.memory_space<vmem>>, vector<1x1xf32>,
    } else {
    }
    %c0 = arith.constant 0 : index
    %c0_1 = arith.constant 0 : index
    %3 = vector.load %arg1[%c0, %c0_1] : memref<8x3xf32, #tpu.memory_space<vmem>>, vector<8x3xf32>
    %c0_2 = arith.constant 0 : index
    %c0_3 = arith.constant 0 : index
    %4 = vector.load %arg2[%c0_2, %c0_3] : memref<8x1xi32, #tpu.memory_space<vmem>>, vector<8x1xi32>
    %5 = tpu.iota {dimensions = array<i32: 1>} : vector<8x3xi32>
    %6 = vector.broadcast %4 : vector<8x1xi32> to vector<8x3xi32>
    %7 = arith.cmpi eq, %5, %6 : vector<8x3xi32>
    %cst = arith.constant 0.000000e+00 : f32
    %8 = vector.broadcast %cst : f32 to vector<8x3xf32>
    %9 = arith.select %7, %3, %8 : vector<8x3xi1>, vector<8x3xf32>
    %cst_4 = arith.constant dense<0.000000e+00> : vector<8xf32>
    %10 = vector.multi_reduction <add>, %9, %cst_4 [1] : vector<8x3xf32> to vector<8xf32>
    %11 = vector.shape_cast %10 : vector<8xf32> to vector<8x1xf32>
    %12 = math.exp %3 : vector<8x3xf32>
    %cst_5 = arith.constant dense<0.000000e+00> : vector<8xf32>
    %13 = vector.multi_reduction <add>, %12, %cst_5 [1] : vector<8x3xf32> to vector<8xf32>
    %14 = vector.shape_cast %13 : vector<8xf32> to vector<8x1xf32>
    %15 = math.log %14 : vector<8x1xf32>
    %c8_i32 = arith.constant 8 : i32
    %16 = arith.muli %arg0, %c8_i32 : i32
    %17 = tpu.iota {dimensions = array<i32: 0>} : vector<8x1xi32>
    %18 = vector.broadcast %16 : i32 to vector<8x1xi32>
    %19 = arith.addi %18, %17 : vector<8x1xi32>
    %c4_i32 = arith.constant 4 : i32
    %20 = vector.broadcast %c4_i32 : i32 to vector<8x1xi32>
    %21 = arith.cmpi slt, %19, %20 : vector<8x1xi32>
    %22 = arith.subf %15, %11 : vector<8x1xf32>
    %cst_6 = arith.constant 0.000000e+00 : f32
    %23 = vector.broadcast %cst_6 : f32 to vector<8x1xf32>
    %24 = arith.select %21, %22, %23 : vector<8x1xi1>, vector<8x1xf32>
    %c0_7 = arith.constant 0 : index
    %c0_8 = arith.constant 0 : index
    %25 = vector.load %arg3[%c0_7, %c0_8] : memref<1x1xf32, #tpu.memory_space<vmem>>, vector<1x1xf32>
    %26 = vector.shape_cast %24 : vector<8x1xf32> to vector<1x8x1xf32>
    %cst_9 = arith.constant dense<0.000000e+00> : vector<1xf32>
    %27 = vector.multi_reduction <add>, %26, %cst_9 [1, 2] : vector<1x8x1xf32> to vector<1xf32>
    %28 = vector.shape_cast %27 : vector<1xf32> to vector<1x1x1xf32>
    %29 = vector.extract %28[0, 0, 0] : f32 from vector<1x1x1xf32>
    %30 = vector.broadcast %29 : f32 to vector<1x1xf32>
    %31 = arith.addf %25, %30 : vector<1x1xf32>
    %c0_10 = arith.constant 0 : index
    %c0_11 = arith.constant 0 : index
    %32 = vector.load %arg3[%c0_10, %c0_11] : memref<1x1xf32, #tpu.memory_space<vmem>>, vector<1x1xf32>
    tpu.vector_store %arg3[%c0_10, %c0_11], %31 {strides = array<i32>} : memref<1x1xf32, #tpu.memory_space<vmem>>, vector<1x1xf32>,
    return
  }
  func.func @transform_0(%arg0: i32) -> (i32, i32) {
    %c0_i32 = arith.constant 0 : i32
    %c0_i32_0 = arith.constant 0 : i32
    return %arg0, %c0_i32 : i32, i32
  }
  func.func @transform_1(%arg0: i32) -> (i32, i32) {
    %c0_i32 = arith.constant 0 : i32
    %c0_i32_0 = arith.constant 0 : i32
    return %arg0, %c0_i32 : i32, i32
  }
  func.func @transform_2(%arg0: i32) -> (i32, i32) {
    %c0_i32 = arith.constant 0 : i32
    %c0_i32_0 = arith.constant 0 : i32
    %c0_i32_1 = arith.constant 0 : i32
    return %c0_i32, %c0_i32_0 : i32, i32
  }
}

</mosaic_0001>

<llo_original>
// kernel: tpu_custom_call.1
$region0: #{tpu_custom_call.1}
  #allocation0 [shape = 'u32[]', space=smem, size = 0x4, offset = 0x4, fixed_abs, tag = 'smem constant byte address 0x4 - core index']
  #allocation1 [shape = 'u32[72,128]{1,0:T(1,128)}', space=vmem, size = 0x9000, scoped, tag = 'internal scratch']
  %s0 = inlined_call_operand.vmem [shape: f32[4,3], index: 0, kind: input, shape index: {}]
  %s1 = inlined_call_operand.vmem [shape: s32[4,1], index: 1, kind: input, shape index: {}]
  %s2 = inlined_call_operand.hbm [shape: f32[1,1], index: 2, kind: output, shape index: {}]
  %s3 = sld [smem:[#allocation0]]
  $region22: #{tpu_custom_call.1} parent=0
    _
  %s5 = ssub.s32 1, %s3
  %s6 = scalar_select 0, %s5, %s3
  $region1: #{tpu_custom_call.1} parent=0
    #allocation2 [shape = 'u8[512]{0}', space=vmem, size = 0x400, scoped, tag = 'output window, operand 0, single buffered']
    #allocation3 [shape = 's32[1]{0}', space=sflag, size = 0x4, scoped, tag = 'scoped memory for tpu_custom_call.1']
    %7 = vsyncpa [#allocation3], 0
    // Predicated region
    $region2: #{tpu_custom_call.1} parent=1 // pred_check
      _
    $region3: #{tpu_custom_call.1} parent=1 // pred_check_branch
      %9 = sbr.rel (0) target = $region5
    $region4: #{tpu_custom_call.1} parent=1 // pred_region
      _
    $region5: #{tpu_custom_call.1} parent=1 // pred_fallthru
      _
    // Predicated region
    $region6: #{tpu_custom_call.1} parent=1 // pred_check
      _
    $region7: #{tpu_custom_call.1} parent=1 // pred_check_branch
      %11 = sbr.rel (0) target = $region9
    $region8: #{tpu_custom_call.1} parent=1 // pred_region
      _
    $region9: #{tpu_custom_call.1} parent=1 // pred_fallthru
      _
    %p12 = scmp.eq.s32.totalorder 0, 0
    // Predicated region
    $region10: #{tpu_custom_call.1} parent=1 // pred_check
      %p13 = pneg %p12
    $region11: #{tpu_custom_call.1} parent=1 // pred_check_branch
      %15 = sbr.rel (%p13) target = $region13
    $region12: #{tpu_custom_call.1} parent=1 // pred_region
      %vm16 = vcmask 0
      %17 = vst.msk [vmem:[#allocation2] sm:$0x1] %vm16, 0.0
    $region13: #{tpu_custom_call.1} parent=1 // pred_fallthru
      _
    %v18 = vld [vmem:[%s0] sm:$0xff]
    %v19 = vld [vmem:[%s1] sm:$0xff]
    %v20 = vlaneseq
    %v21 = vand.u32 %v20, 127
    %22 = vset.pattern.permute.xlu0 0
    %23 = vperm.xlu0 %22, %v19
    %v24 = vpop.permute.xlu0 %23
    %vm25 = vcmp.eq.s32.totalorder %v21, %v24
    %v26 = vsel %vm25, %v18, 0.0
    %vm27 = vcmask 23552
    %v28 = vsel %vm27, %v26, 0.0
    %29 = vadd.xlane.f32.xlu0 %v28
    %v30 = vpop.xlane.xlu0 %29
    %v31 = vmul.f32 %v18, 1.442695
    %v32 = vpow.pop %v31
    %v33 = vsel %vm27, %v32, 0.0
    %34 = vadd.xlane.f32.xlu0 %v33
    %v35 = vpop.xlane.xlu0 %34
    %v36 = vlog2.pop %v35
    %v37 = vmul.f32 %v36, 0.6931472
    %s38 = smul.u32 0, 8
    %v39 = vlaneseq
    %v40 = vshrl.u32 %v39, 7
    %v41 = vstv %s38
    %v42 = vadd.s32 %v41, %v40
    %vm43 = vcmp.lt.s32.totalorder %v42, 4
    %v44 = vsub.f32 %v37, %v30
    %v45 = vsel %vm43, %v44, 0.0
    %v46 = vld [vmem:[#allocation2] sm:$0x1]
    %vm47 = vcmask 7168
    %v48 = vsel %vm47, %v45, 0.0
    %49 = vadd.xlane.f32.xlu0 %v48
    %v50 = vpop.xlane.xlu0 %49
    %v51 = vrot.slane %v50, 4
    %v52 = vadd.f32 %v50, %v51
    %v53 = vrot.slane %v52, 2
    %v54 = vadd.f32 %v52, %v53
    %v55 = vrot.slane %v54, 1
    %v56 = vadd.f32 %v54, %v55
    %s57 = vtos %v56
    %v58 = vstv %s57
    %v59 = vadd.f32 %v46, %v58
    %vm60 = vcmask 0
    %61 = vst.msk [vmem:[#allocation2] sm:$0x1] %vm60, %v59
    // Predicated region
    $region14: #{tpu_custom_call.1} parent=1 // pred_check
      _
    $region15: #{tpu_custom_call.1} parent=1 // pred_check_branch
      %63 = sbr.rel (0) target = $region17
    $region16: #{tpu_custom_call.1} parent=1 // pred_region
      %65 = vsyncadd [#allocation3], 0
      %s67 = sshll.u32 [#allocation2], 4
      %s68 = int_to_ptr.vmem [resolvable:$true] %s67
      %s69 = sshll.u32 %s2, 4
      %s70 = int_to_ptr.hbm [resolvable:$true] %s69
      %72 = dma.vmem_to_hbm [thread:$0]  %s68, 16, %s70, [#allocation3]
    $region17: #{tpu_custom_call.1} parent=1 // pred_fallthru
      _
    // Predicated region
    $region18: #{tpu_custom_call.1} parent=1 // pred_check
      _
    $region19: #{tpu_custom_call.1} parent=1 // pred_check_branch
      %74 = sbr.rel (0) target = $region21
    $region20: #{tpu_custom_call.1} parent=1 // pred_region
      %76 = dma.done [#allocation3], 16
    $region21: #{tpu_custom_call.1} parent=1 // pred_fallthru
      _
    %77 = vsyncpa [#allocation3], 1

</llo_original>
